<compile_context>
chip_gen: v6e
topology: v6e:2x2x1
jax: 0.10.0
libtpu: 0.0.40
codegen_flags: <defaults>
</compile_context>

<pallas_src>
import functools

import jax
import jax.numpy as jnp
from jax.experimental import pallas as pl
from jax.experimental.pallas import tpu as pltpu

_LANE = 128
_VMEM_LIMIT_BYTES = 48 << 20   # scoped-VMEM ceiling requested from Mosaic
_VMEM_BUDGET_BYTES = 36 << 20  # what our own (double-buffered) blocks may use
_BLOCK_CAP_BYTES = 12 << 20    # input-block target; amortizes ~0.35us/step


def _round_up(x, m):
    return -(-x // m) * m


def _sublane(dtype):
    # Sublane packing multiple: f32 -> 8, bf16/f16 -> 16, int8/fp8 -> 32.
    return {4: 8, 2: 16, 1: 32}.get(jnp.dtype(dtype).itemsize, 8)


def _mean_pool_kernel(x_ref, o_ref, acc_ref, *, inv_t, k, d):
    """Grid (nb, nt): batch blocks ("parallel") x T-chunks ("arbitrary")."""
    ti = pl.program_id(1)

    @pl.when(ti == 0)
    def _init():
        acc_ref[...] = jnp.zeros_like(acc_ref)

    # Reduce this T-chunk, accumulating in f32 without materializing an
    # explicit f32 copy of the whole (tb, t_chunk, k*d) block first.
    s = jnp.sum(x_ref[...], axis=1, dtype=jnp.float32)          # (tb, k*d)
    # Fold the k time steps that were packed onto one lane row back onto D.
    r = s[:, 0:d]
    for j in range(1, k):
        r = r + s[:, j * d:(j + 1) * d]
    acc_ref[...] += r

    @pl.when(ti == pl.num_programs(1) - 1)
    def _finalize():
        o_ref[...] = (acc_ref[...] * inv_t).astype(o_ref.dtype)


def _choose_tiling(B, Tc, Dp, D, dtype):
    """Pick (tb, nb, t_chunk, nt). Returns None if nothing legal fits VMEM.

    Footprints are computed from the *padded* VMEM tiles: second-to-last dim
    rounded to the dtype sublane multiple, last dim rounded to 128 lanes.
    """
    itemsize = jnp.dtype(dtype).itemsize
    sub = _sublane(dtype)

    def in_bytes(tb, tc):          # one (tb, tc, Dp) input block in VMEM
        return tb * _round_up(tc, sub) * _round_up(Dp, _LANE) * itemsize

    def tmp_bytes(tb, tc):         # headroom for an f32 reduce temp (< f32 dtypes)
        if itemsize >= 4:
            return 0
        return tb * _round_up(tc, 8) * _round_up(Dp, _LANE) * 4

    def fixed_bytes(tb):           # double-buffered output block + f32 accumulator
        return (2 * _round_up(tb, sub) * _round_up(D, _LANE) * itemsize
                + _round_up(tb, 8) * _round_up(D, _LANE) * 4)

    def fits(tb, tc):              # hard scoped-VMEM constraint (double-buffered in)
        return 2 * in_bytes(tb, tc) + tmp_bytes(tb, tc) + fixed_bytes(tb) \
            <= _VMEM_BUDGET_BYTES

    tb_min = B if B < sub else sub

    if fits(tb_min, Tc):
        # Common case: whole T per step; grow the batch block toward ~12 MiB.
        t_chunk, nt = Tc, 1
        per_in = in_bytes(1, Tc)
        per_tot = 2 * per_in + tmp_bytes(1, Tc)
        rows = min(_BLOCK_CAP_BYTES // per_in, _VMEM_BUDGET_BYTES // per_tot)
        rows = max(sub, (rows // sub) * sub)
        while rows > sub and not fits(rows, Tc):
            rows -= sub

        if B <= rows:
            # Small batch: split in two (if possible) so both v7x TCs stream;
            # otherwise take all of B as one full-dim block.
            tb = max(sub, (B // 2) // sub * sub) if B >= 2 * sub else B
        else:
            tb = rows
            # Prefer a tb that divides B exactly (kills the tail pass) as long
            # as it stays within 2x of the target block size.
            cand = tb
            while cand >= max(sub, tb // 2):
                if B % cand == 0:
                    tb = cand
                    break
                cand -= sub
        return tb, max(1, B // tb), t_chunk, nt

    # Rows too large for VMEM even at the minimum batch block: split T across
    # a second ("arbitrary") grid axis.  t_chunk must divide Tc *and* be a
    # multiple of the sublane packing so every block is exactly in bounds and
    # (8, 128)-aligned — no reliance on out-of-bounds block semantics.
    tb = tb_min
    avail = _VMEM_BUDGET_BYTES - fixed_bytes(tb)
    per_sub = 2 * in_bytes(tb, sub) + tmp_bytes(tb, sub)
    if Tc < sub or avail < per_sub:
        return None
    c = min((Tc // sub) * sub, (avail // per_sub) * sub)
    while c >= sub and (Tc % c != 0 or not fits(tb, c)):
        c -= sub
    if c < sub:
        return None
    return tb, max(1, B // tb), c, Tc // c


def mean_pooler(x, T, dim=1):
    """Pallas implementation of MeanPooler.forward."""
    assert dim == 1, "MeanPooler kernel implemented for dim=1 (module default)"
    feat_dim = x.shape[-1]
    if x.size % (T * feat_dim) != 0:
        raise ValueError(
            f"MeanPooler: cannot view {x.size} elements as (-1, T={T}, "
            f"feat_dim={feat_dim}); leading dims must be a multiple of T.")
    B = x.size // (T * feat_dim)
    dtype = x.dtype
    itemsize = jnp.dtype(dtype).itemsize
    inv_t = 1.0 / float(T)

    # Lane packing: fold k consecutive time steps onto one lane row when
    # feat_dim < 128.  Pure reshape of the contiguous row-major layout.
    k = 1
    if feat_dim < _LANE:
        for cand in range(_LANE // feat_dim, 1, -1):
            if T % cand == 0:
                k = cand
                break
    Tc, Dp = T // k, k * feat_dim
    x_view = x.reshape(B, Tc, Dp)          # zero-copy view

    tiling = _choose_tiling(B, Tc, Dp, feat_dim, dtype)
    if tiling is None:
        # TODO(synk): add a third ("parallel") grid axis splitting feat_dim for
        # rows so wide that even a minimal block exceeds VMEM; XLA mean for now.
        s = jnp.sum(x_view, axis=1, dtype=jnp.float32)
        if k > 1:
            s = jnp.sum(s.reshape(B, k, feat_dim), axis=1)
        return (s * inv_t).astype(dtype)

    tb, nb, t_chunk, nt = tiling
    main_rows = nb * tb
    tail = B - main_rows

    out_main = pl.pallas_call(
        functools.partial(_mean_pool_kernel, inv_t=inv_t, k=k, d=feat_dim),
        out_shape=jax.ShapeDtypeStruct((main_rows, feat_dim), dtype),
        grid_spec=pltpu.PrefetchScalarGridSpec(
            num_scalar_prefetch=0,
            grid=(nb, nt),
            in_specs=[pl.BlockSpec((tb, t_chunk, Dp), lambda b, t: (b, t, 0))],
            out_specs=pl.BlockSpec((tb, feat_dim), lambda b, t: (b, 0)),
            scratch_shapes=[pltpu.VMEM((tb, feat_dim), jnp.float32)],
        ),
        compiler_params=pltpu.CompilerParams(
            dimension_semantics=("parallel", "arbitrary"),
            vmem_limit_bytes=_VMEM_LIMIT_BYTES,
        ),
        cost_estimate=pl.CostEstimate(
            flops=int(main_rows) * int(T) * int(feat_dim),
            transcendentals=0,
            bytes_accessed=int(main_rows) * int(T) * int(feat_dim) * itemsize
            + int(main_rows) * int(feat_dim) * itemsize,
        ),
    )(x_view)

    if tail == 0:
        return out_main

    # Tiny batch remainder (< tb rows): fused XLA reduce over only those rows.
    xt = x_view[main_rows:]
    s = jnp.sum(xt, axis=1, dtype=jnp.float32)
    if k > 1:
        s = jnp.sum(s.reshape(tail, k, feat_dim), axis=1)
    out_tail = (s * inv_t).astype(dtype)
    return jnp.concatenate([out_main, out_tail], axis=0)


if __name__ == "__main__":
    key = jax.random.PRNGKey(0)

    # Input as the module would receive it: (B*T, feat_dim) rows.
    B, T, D = 2, 8, 32
    x = jax.random.normal(key, (B * T, D), dtype=jnp.float32)
    out = jax.block_until_ready(mean_pooler(x, T=T, dim=1))
    ref = jnp.mean(x.reshape(-1, T, D), axis=1)
    assert out.shape == (B, D)
    assert jnp.allclose(out, ref, atol=1e-5, rtol=1e-5)

    # Second small shape exercising the multi-block batch path + jnp tail.
    B2 = 20
    x2 = jax.random.normal(jax.random.PRNGKey(1), (B2 * T, D), dtype=jnp.float32)
    out2 = jax.block_until_ready(mean_pooler(x2, T=T, dim=1))
    ref2 = jnp.mean(x2.reshape(-1, T, D), axis=1)
    assert out2.shape == (B2, D)
    assert jnp.allclose(out2, ref2, atol=1e-5, rtol=1e-5)

    print("KERNEL_OK")
</pallas_src>

<mosaic_0001>
module attributes {stable_mosaic.version = 11 : i64} {
  func.func @_mean_pool_kernel(%arg0: i32, %arg1: i32, %arg2: memref<2x2x128xf32, #tpu.memory_space<vmem>>, %arg3: memref<2x32xf32, #tpu.memory_space<vmem>>, %arg4: memref<2x32xf32, #tpu.memory_space<vmem>>) attributes {dimension_semantics = [#tpu.dimension_semantics<parallel>, #tpu.dimension_semantics<arbitrary>], iteration_bounds = array<i64: 1, 1>, scalar_prefetch = 0 : i64, scratch_operands = 1 : i64, tpu.core_type = #tpu.core_type<tc>, window_params = [{transform_indices = @transform_0, window_bounds = array<i64: 2, 2, 128>}, {transform_indices = @transform_1, window_bounds = array<i64: 2, 32>}]} {
    %c0_i32 = arith.constant 0 : i32
    %0 = arith.cmpi eq, %arg1, %c0_i32 : i32
    %1 = arith.extui %0 : i1 to i32
    %c0_i32_0 = arith.constant 0 : i32
    %2 = arith.cmpi ne, %1, %c0_i32_0 : i32
    scf.if %2 {
      %cst_9 = arith.constant 0.000000e+00 : f32
      %18 = vector.broadcast %cst_9 : f32 to vector<2x32xf32>
      %c0_10 = arith.constant 0 : index
      %c0_11 = arith.constant 0 : index
      %19 = vector.load %arg4[%c0_10, %c0_11] : memref<2x32xf32, #tpu.memory_space<vmem>>, vector<2x32xf32>
      tpu.vector_store %arg4[%c0_10, %c0_11], %18 {strides = array<i32>} : memref<2x32xf32, #tpu.memory_space<vmem>>, vector<2x32xf32>,
    } else {
    }
    %c0 = arith.constant 0 : index
    %c0_1 = arith.constant 0 : index
    %c0_2 = arith.constant 0 : index
    %3 = vector.load %arg2[%c0, %c0_1, %c0_2] : memref<2x2x128xf32, #tpu.memory_space<vmem>>, vector<2x2x128xf32>
    %cst = arith.constant dense<0.000000e+00> : vector<2x128xf32>
    %4 = vector.multi_reduction <add>, %3, %cst [1] : vector<2x2x128xf32> to vector<2x128xf32>
    %5 = vector.extract_strided_slice %4 {offsets = [0, 0], sizes = [2, 32], strides = [1, 1]} : vector<2x128xf32> to vector<2x32xf32>
    %6 = vector.extract_strided_slice %4 {offsets = [0, 32], sizes = [2, 32], strides = [1, 1]} : vector<2x128xf32> to vector<2x32xf32>
    %7 = arith.addf %5, %6 : vector<2x32xf32>
    %8 = vector.extract_strided_slice %4 {offsets = [0, 64], sizes = [2, 32], strides = [1, 1]} : vector<2x128xf32> to vector<2x32xf32>
    %9 = arith.addf %7, %8 : vector<2x32xf32>
    %10 = vector.extract_strided_slice %4 {offsets = [0, 96], sizes = [2, 32], strides = [1, 1]} : vector<2x128xf32> to vector<2x32xf32>
    %11 = arith.addf %9, %10 : vector<2x32xf32>
    %c0_3 = arith.constant 0 : index
    %c0_4 = arith.constant 0 : index
    %12 = vector.load %arg4[%c0_3, %c0_4] : memref<2x32xf32, #tpu.memory_space<vmem>>, vector<2x32xf32>
    %13 = arith.addf %12, %11 : vector<2x32xf32>
    %c0_5 = arith.constant 0 : index
    %c0_6 = arith.constant 0 : index
    %14 = vector.load %arg4[%c0_5, %c0_6] : memref<2x32xf32, #tpu.memory_space<vmem>>, vector<2x32xf32>
    tpu.vector_store %arg4[%c0_5, %c0_6], %13 {strides = array<i32>} : memref<2x32xf32, #tpu.memory_space<vmem>>, vector<2x32xf32>,
    %c0_i32_7 = arith.constant 0 : i32
    %15 = arith.cmpi eq, %arg1, %c0_i32_7 : i32
    %16 = arith.extui %15 : i1 to i32
    %c0_i32_8 = arith.constant 0 : i32
    %17 = arith.cmpi ne, %16, %c0_i32_8 : i32
    scf.if %17 {
      %c0_9 = arith.constant 0 : index
      %c0_10 = arith.constant 0 : index
      %18 = vector.load %arg4[%c0_9, %c0_10] : memref<2x32xf32, #tpu.memory_space<vmem>>, vector<2x32xf32>
      %cst_11 = arith.constant 1.250000e-01 : f32
      %19 = vector.broadcast %cst_11 : f32 to vector<2x32xf32>
      %20 = arith.mulf %18, %19 : vector<2x32xf32>
      %c0_12 = arith.constant 0 : index
      %c0_13 = arith.constant 0 : index
      %21 = vector.load %arg3[%c0_12, %c0_13] : memref<2x32xf32, #tpu.memory_space<vmem>>, vector<2x32xf32>
      tpu.vector_store %arg3[%c0_12, %c0_13], %20 {strides = array<i32>} : memref<2x32xf32, #tpu.memory_space<vmem>>, vector<2x32xf32>,
    } else {
    }
    return
  }
  func.func @transform_0(%arg0: i32, %arg1: i32) -> (i32, i32, i32) {
    %c0_i32 = arith.constant 0 : i32
    %c0_i32_0 = arith.constant 0 : i32
    return %arg0, %arg1, %c0_i32 : i32, i32, i32
  }
  func.func @transform_1(%arg0: i32, %arg1: i32) -> (i32, i32) {
    %c0_i32 = arith.constant 0 : i32
    %c0_i32_0 = arith.constant 0 : i32
    return %arg0, %c0_i32 : i32, i32
  }
}

</mosaic_0001>

<llo_original>
// kernel: tpu_custom_call.1
$region0: #{tpu_custom_call.1}
  #allocation0 [shape = 'u32[]', space=smem, size = 0x4, offset = 0x4, fixed_abs, tag = 'smem constant byte address 0x4 - core index']
  #allocation1 [shape = 'u32[144,128]{1,0:T(1,128)}', space=vmem, size = 0x12000, scoped, tag = 'internal scratch']
  #allocation2 [shape = 'f32[2,32]{1,0:T(2,128)}', space=vmem, size = 0x400, scoped, tag = 'scratch operand']
  %s0 = inlined_call_operand.hbm [shape: f32[2,2,128], index: 0, kind: input, shape index: {}]
  %s1 = inlined_call_operand.hbm [shape: f32[2,32], index: 1, kind: output, shape index: {}]
  %s2 = sld [smem:[#allocation0]]
  $region26: #{tpu_custom_call.1} parent=0
    _
  %s4 = ssub.s32 1, %s2
  %s5 = scalar_select 0, %s4, %s2
  $region1: #{tpu_custom_call.1} parent=0
    #allocation3 [shape = 'u8[2048]{0}', space=vmem, size = 0x800, scoped, tag = 'input window, operand 0, single buffered']
    #allocation4 [shape = 's32[1]{0}', space=sflag, size = 0x4, scoped, tag = 'scoped memory for tpu_custom_call.1']
    #allocation5 [shape = 's32[1]{0}', space=sflag, size = 0x4, scoped, tag = 'scoped memory for tpu_custom_call.1']
    #allocation6 [shape = 'u8[1024]{0}', space=vmem, size = 0x400, scoped, tag = 'output window, operand 0, single buffered']
    %6 = vsyncpa [#allocation4], 0
    %7 = vsyncpa [#allocation5], 0
    // Predicated region
    $region2: #{tpu_custom_call.1} parent=1 // pred_check
      _
    $region3: #{tpu_custom_call.1} parent=1 // pred_check_branch
      %9 = sbr.rel (0) target = $region5
    $region4: #{tpu_custom_call.1} parent=1 // pred_region
      %s11 = ssub.s32 64, 64
      %12 = vsyncadd [#allocation4], %s11
      %s13 = sshll.u32 [#allocation3], 4
      %s14 = int_to_ptr.vmem [resolvable:$true] %s13
      %19 = dma.hbm_to_vmem [thread:$0]  %s0, 64, %s14, [#allocation4], 32, 32, 2
    $region5: #{tpu_custom_call.1} parent=1 // pred_fallthru
      _
    // Predicated region
    $region6: #{tpu_custom_call.1} parent=1 // pred_check
      _
    $region7: #{tpu_custom_call.1} parent=1 // pred_check_branch
      %21 = sbr.rel (0) target = $region9
    $region8: #{tpu_custom_call.1} parent=1 // pred_region
      %22 = dma.done [#allocation4], 64
    $region9: #{tpu_custom_call.1} parent=1 // pred_fallthru
      _
    %p23 = scmp.eq.s32.totalorder 0, 0
    // Predicated region
    $region10: #{tpu_custom_call.1} parent=1 // pred_check
      %p24 = pneg %p23
    $region11: #{tpu_custom_call.1} parent=1 // pred_check_branch
      %26 = sbr.rel (%p24) target = $region13
    $region12: #{tpu_custom_call.1} parent=1 // pred_region
      %vm27 = vcmask 254976
      %28 = vst.msk [vmem:[#allocation2] sm:$0x3] %vm27, 0.0
    $region13: #{tpu_custom_call.1} parent=1 // pred_fallthru
      _
    %v29 = vld [vmem:[#allocation3] sm:$0x3]
    %v30 = vld [vmem:[#allocation3 + $0x2] sm:$0x3]
    %vm31 = vcmask 1041408
    %v32 = vsel %vm31, %v29, 0.0
    %v33 = vrot.slane %v32, 4
    %v34 = vadd.f32 %v32, %v33
    %v35 = vrot.slane %v34, 2
    %v36 = vadd.f32 %v34, %v35
    %v37 = vrot.slane %v36, 1
    %v38 = vadd.f32 %v36, %v37
    %v39 = vsel %vm31, %v30, 0.0
    %v40 = vrot.slane %v39, 4
    %v41 = vadd.f32 %v39, %v40
    %v42 = vrot.slane %v41, 2
    %v43 = vadd.f32 %v41, %v42
    %v44 = vrot.slane %v43, 1
    %v45 = vadd.f32 %v43, %v44
    %48 = vrot.lane.b32.xlu0 %v38, 96
    %v49 = vpop.permute.xlu0 %48
    %50 = vrot.lane.b32.xlu0 %v45, 96
    %v51 = vpop.permute.xlu0 %50
    %v54 = vadd.f32 %v38, %v49
    %v55 = vadd.f32 %v45, %v51
    %56 = vrot.lane.b32.xlu0 %v38, 64
    %v57 = vpop.permute.xlu0 %56
    %58 = vrot.lane.b32.xlu0 %v45, 64
    %v59 = vpop.permute.xlu0 %58
    %v62 = vadd.f32 %v54, %v57
    %v63 = vadd.f32 %v55, %v59
    %64 = vrot.lane.b32.xlu0 %v38, 32
    %v65 = vpop.permute.xlu0 %64
    %66 = vrot.lane.b32.xlu0 %v45, 32
    %v67 = vpop.permute.xlu0 %66
    %v70 = vadd.f32 %v62, %v65
    %v71 = vadd.f32 %v63, %v67
    %v72 = vld [vmem:[#allocation2] sm:$0x3]
    %v75 = vrot.slane %v71, 7
    %vm76 = vcmask 1041409
    %v77 = vsel %vm76, %v75, %v70
    %v79 = vadd.f32 %v72, %v77
    %vm80 = vcmask 254976
    %81 = vst.msk [vmem:[#allocation2] sm:$0x3] %vm80, %v79
    // Predicated region
    $region14: #{tpu_custom_call.1} parent=1 // pred_check
      %p82 = pneg %p23
    $region15: #{tpu_custom_call.1} parent=1 // pred_check_branch
      %84 = sbr.rel (%p82) target = $region17
    $region16: #{tpu_custom_call.1} parent=1 // pred_region
      %v85 = vld [vmem:[#allocation2] sm:$0x3]
      %v86 = vmul.f32 %v85, 0.125
      %87 = vst.msk [vmem:[#allocation6] sm:$0x3] %vm80, %v86
    $region17: #{tpu_custom_call.1} parent=1 // pred_fallthru
      _
    // Predicated region
    $region18: #{tpu_custom_call.1} parent=1 // pred_check
      _
    $region19: #{tpu_custom_call.1} parent=1 // pred_check_branch
      %89 = sbr.rel (0) target = $region21
    $region20: #{tpu_custom_call.1} parent=1 // pred_region
      %s91 = ssub.s32 32, 32
      %92 = vsyncadd [#allocation5], %s91
      %s94 = sshll.u32 [#allocation6], 4
      %s95 = int_to_ptr.vmem [resolvable:$true] %s94
      %97 = dma.vmem_to_hbm [thread:$0]  %s95, 32, %s1, [#allocation5]
    $region21: #{tpu_custom_call.1} parent=1 // pred_fallthru
      _
    // Predicated region
    $region22: #{tpu_custom_call.1} parent=1 // pred_check
      _
    $region23: #{tpu_custom_call.1} parent=1 // pred_check_branch
      %99 = sbr.rel (0) target = $region25
    $region24: #{tpu_custom_call.1} parent=1 // pred_region
      %100 = dma.done [#allocation5], 32
    $region25: #{tpu_custom_call.1} parent=1 // pred_fallthru
      _
    %101 = vsyncpa [#allocation4], 1
    %102 = vsyncpa [#allocation5], 1

</llo_original>
